<compile_context>
chip_gen: v7x
topology: tpu7x:2x2x1
jax: 0.10.0
libtpu: 0.0.40
codegen_flags: <defaults>
</compile_context>

<pallas_src>
import functools

import jax
import jax.numpy as jnp
from jax.experimental import pallas as pl
from jax.experimental.pallas import tpu as pltpu


def _round_up(a, m):
    return (a + m - 1) // m * m


def _device_kind():
    try:
        return jax.devices()[0].device_kind.lower()
    except Exception:
        return ""


_KIND = _device_kind()
_IS_V5E = ("v5 lite" in _KIND) or ("v5e" in _KIND) or ("v5lite" in _KIND)
_IS_V7 = "v7" in _KIND

# v5e: smaller default scoped VMEM -> smaller batch tile; no bf16 EUP -> f32 tanh.
_DEFAULT_BATCH_TILE = 256 if _IS_V5E else 512
_DEFAULT_TANH_BF16 = not _IS_V5E
# v7x: make sure the parallel batch grid has >= 2 steps so both TCs get work.
_DEFAULT_MIN_GRID_STEPS = 2 if _IS_V7 else 1


# --------------------------------------------------------------------------- #
# Kernel
# --------------------------------------------------------------------------- #
def _policy_kernel(x_ref, w1_ref, b1_ref, w2_ref, b2_ref, wh_ref, bh_ref,
                   out_ref, *, tanh_dtype):
    # bf16 operands into the MXU, f32 accumulation; bias adds in f32.
    x = x_ref[...]                                                    # [bt, D_in]
    if x.dtype != jnp.bfloat16:
        x = x.astype(jnp.bfloat16)

    h1 = jnp.dot(x, w1_ref[...], preferred_element_type=jnp.float32) + b1_ref[...]
    h1 = jnp.tanh(h1.astype(tanh_dtype)).astype(jnp.bfloat16)        # [bt, H]

    h2 = jnp.dot(h1, w2_ref[...], preferred_element_type=jnp.float32) + b2_ref[...]
    p = jnp.tanh(h2.astype(tanh_dtype)).astype(jnp.bfloat16)         # [bt, H]

    # Fused (policy | value | zero-pad) head -> lane-dense [bt, head_pad] write.
    out_ref[...] = (
        jnp.dot(p, wh_ref[...], preferred_element_type=jnp.float32) + bh_ref[...]
    ).astype(out_ref.dtype)


# --------------------------------------------------------------------------- #
# One-time parameter preparation (hoisted out of the per-call path)
# --------------------------------------------------------------------------- #
def prepare_params(params):
    """Fuse policy|value heads, zero-pad to a lane-dense multiple of 128 columns,
    and cast matmul weights to bf16 (biases stay f32). Call once per weight set."""
    num_outputs = params["wp"].shape[1]
    head_w = num_outputs + 1
    head_pad = _round_up(head_w, 128)
    wh = jnp.pad(jnp.concatenate([params["wp"], params["wv"]], axis=1),
                 ((0, 0), (0, head_pad - head_w)))                    # [H, head_pad]
    bh = jnp.pad(jnp.concatenate([params["bp"], params["bv"]], axis=1),
                 ((0, 0), (0, head_pad - head_w)))                    # [1, head_pad]
    prep = {
        "w1": params["w1"].astype(jnp.bfloat16),
        "b1": params["b1"].astype(jnp.float32),
        "w2": params["w2"].astype(jnp.bfloat16),
        "b2": params["b2"].astype(jnp.float32),
        "wh": wh.astype(jnp.bfloat16),
        "bh": bh.astype(jnp.float32),
    }
    return prep, num_outputs


def _const_spec(a):
    """Whole-array, grid-invariant operand. Buffered(1): constant-index operands
    are DMA'd once, so double-buffering them only wastes resident VMEM."""
    nd = a.ndim
    idx = lambda i: (0,) * nd
    try:
        return pl.BlockSpec(a.shape, idx, pipeline_mode=pl.Buffered(1))
    except (TypeError, AttributeError):   # older jax: fall back to default buffering
        return pl.BlockSpec(a.shape, idx)


# --------------------------------------------------------------------------- #
# Jitted forward wrapper
# --------------------------------------------------------------------------- #
@functools.partial(
    jax.jit,
    static_argnames=("num_outputs", "batch_tile", "tanh_bf16", "min_grid_steps"),
)
def policy_network_forward(
    x,
    prep,
    *,
    num_outputs,
    batch_tile=_DEFAULT_BATCH_TILE,
    tanh_bf16=_DEFAULT_TANH_BF16,
    min_grid_steps=_DEFAULT_MIN_GRID_STEPS,
):
    """x: [B, input_dim] (f32 or bf16). Returns (logits [B, num_outputs] f32,
    value [B] f32) — i.e. forward() logits and value_function()."""
    B, input_dim = x.shape
    head_pad = prep["wh"].shape[1]

    # ---- balanced batch tiling ---------------------------------------------
    n = pl.cdiv(B, batch_tile)
    if B > 64:                       # enough rows to be worth splitting
        n = max(n, min_grid_steps)   # v7x: >= 2 steps so both TCs participate
    bt = _round_up(pl.cdiv(B, n), 8)
    padded_B = n * bt
    if padded_B != B:
        x = jnp.pad(x, ((0, padded_B - B), (0, 0)))

    kernel = functools.partial(
        _policy_kernel,
        tanh_dtype=jnp.bfloat16 if tanh_bf16 else jnp.float32,
    )

    out = pl.pallas_call(
        kernel,
        out_shape=jax.ShapeDtypeStruct((padded_B, head_pad), jnp.bfloat16),
        grid=(n,),
        in_specs=[
            pl.BlockSpec((bt, input_dim), lambda i: (i, 0)),   # x streamed per tile
            _const_spec(prep["w1"]), _const_spec(prep["b1"]),  # weights VMEM-resident
            _const_spec(prep["w2"]), _const_spec(prep["b2"]),
            _const_spec(prep["wh"]), _const_spec(prep["bh"]),
        ],
        out_specs=pl.BlockSpec((bt, head_pad), lambda i: (i, 0)),
        compiler_params=pltpu.CompilerParams(
            dimension_semantics=("parallel",)),                # megacore / 2-TC shard
    )(x, prep["w1"], prep["b1"], prep["w2"], prep["b2"], prep["wh"], prep["bh"])

    logits = out[:B, :num_outputs].astype(jnp.float32)
    value = out[:B, num_outputs].astype(jnp.float32)   # == value_head(p).squeeze(1)
    return logits, value


# --------------------------------------------------------------------------- #
# Parameter init mirroring the torch normal_() calls (std=1.0 core, 0.01 heads)
# --------------------------------------------------------------------------- #
def init_params(key, input_dim, core_hidden_dim, num_outputs):
    ks = jax.random.split(key, 8)
    f32 = jnp.float32
    return {
        "w1": jax.random.normal(ks[0], (input_dim, core_hidden_dim), f32) * 1.0,
        "b1": jax.random.normal(ks[1], (1, core_hidden_dim), f32) * 1.0,
        "w2": jax.random.normal(ks[2], (core_hidden_dim, core_hidden_dim), f32) * 1.0,
        "b2": jax.random.normal(ks[3], (1, core_hidden_dim), f32) * 1.0,
        "wp": jax.random.normal(ks[4], (core_hidden_dim, num_outputs), f32) * 0.01,
        "bp": jax.random.normal(ks[5], (1, num_outputs), f32) * 0.01,
        "wv": jax.random.normal(ks[6], (core_hidden_dim, 1), f32) * 0.01,
        "bv": jax.random.normal(ks[7], (1, 1), f32) * 0.01,
    }


if __name__ == "__main__":
    # Small shapes implied by the module: obs_flat [B, input_dim],
    # core_hidden_dim hidden, num_outputs action logits.
    B, input_dim, core_hidden_dim, num_outputs = 8, 16, 32, 4

    key = jax.random.PRNGKey(0)
    kx, kp = jax.random.split(key)
    x = jax.random.normal(kx, (B, input_dim), jnp.float32)
    params = init_params(kp, input_dim, core_hidden_dim, num_outputs)

    prep, n_out = prepare_params(params)
    logits, value = policy_network_forward(x, prep, num_outputs=n_out)
    jax.block_until_ready((logits, value))

    # Plain-JAX f32 reference. The kernel uses bf16 matmul operands / bf16
    # output with f32 accumulation, so tolerances are relaxed accordingly.
    def ref(xv):
        h1 = jnp.tanh(xv @ params["w1"] + params["b1"])
        p = jnp.tanh(h1 @ params["w2"] + params["b2"])
        return (p @ params["wp"] + params["bp"],
                (p @ params["wv"] + params["bv"])[:, 0])

    ref_logits, ref_value = ref(x)
    assert logits.shape == (B, num_outputs) and value.shape == (B,)
    assert jnp.allclose(logits, ref_logits, atol=5e-2, rtol=5e-2)
    assert jnp.allclose(value, ref_value, atol=5e-2, rtol=5e-2)

    # Exercise the multi-tile / padded-batch path (B not a multiple of 8, grid > 1).
    B2 = 300
    x2 = jax.random.normal(jax.random.PRNGKey(1), (B2, input_dim), jnp.float32)
    logits2, value2 = policy_network_forward(x2, prep, num_outputs=n_out,
                                             batch_tile=128)
    jax.block_until_ready((logits2, value2))
    ref_logits2, ref_value2 = ref(x2)
    assert logits2.shape == (B2, num_outputs) and value2.shape == (B2,)
    assert jnp.allclose(logits2, ref_logits2, atol=5e-2, rtol=5e-2)
    assert jnp.allclose(value2, ref_value2, atol=5e-2, rtol=5e-2)

    print("KERNEL_OK")
</pallas_src>

<mosaic_0001>
module attributes {stable_mosaic.version = 11 : i64} {
  func.func @_policy_kernel(%arg0: i32, %arg1: memref<8x16xf32, #tpu.memory_space<vmem>>, %arg2: memref<16x32xbf16, #tpu.memory_space<vmem>>, %arg3: memref<1x32xf32, #tpu.memory_space<vmem>>, %arg4: memref<32x32xbf16, #tpu.memory_space<vmem>>, %arg5: memref<1x32xf32, #tpu.memory_space<vmem>>, %arg6: memref<32x128xbf16, #tpu.memory_space<vmem>>, %arg7: memref<1x128xf32, #tpu.memory_space<vmem>>, %arg8: memref<8x128xbf16, #tpu.memory_space<vmem>>) attributes {dimension_semantics = [#tpu.dimension_semantics<parallel>], iteration_bounds = array<i64: 1>, scalar_prefetch = 0 : i64, scratch_operands = 0 : i64, tpu.core_type = #tpu.core_type<tc>, window_params = [{transform_indices = @transform_0, window_bounds = array<i64: 8, 16>}, {pipeline_mode = #tpu.pipeline_mode<synchronous>, transform_indices = @transform_1, window_bounds = array<i64: 16, 32>}, {pipeline_mode = #tpu.pipeline_mode<synchronous>, transform_indices = @transform_2, window_bounds = array<i64: 1, 32>}, {pipeline_mode = #tpu.pipeline_mode<synchronous>, transform_indices = @transform_3, window_bounds = array<i64: 32, 32>}, {pipeline_mode = #tpu.pipeline_mode<synchronous>, transform_indices = @transform_4, window_bounds = array<i64: 1, 32>}, {pipeline_mode = #tpu.pipeline_mode<synchronous>, transform_indices = @transform_5, window_bounds = array<i64: 32, 128>}, {pipeline_mode = #tpu.pipeline_mode<synchronous>, transform_indices = @transform_6, window_bounds = array<i64: 1, 128>}, {transform_indices = @transform_7, window_bounds = array<i64: 8, 128>}]} {
    %c0 = arith.constant 0 : index
    %c0_0 = arith.constant 0 : index
    %0 = vector.load %arg1[%c0, %c0_0] : memref<8x16xf32, #tpu.memory_space<vmem>>, vector<8x16xf32>
    %1 = arith.truncf %0 : vector<8x16xf32> to vector<8x16xbf16>
    %c0_1 = arith.constant 0 : index
    %c0_2 = arith.constant 0 : index
    %2 = vector.load %arg2[%c0_1, %c0_2] : memref<16x32xbf16, #tpu.memory_space<vmem>>, vector<16x32xbf16>
    %cst = arith.constant dense<0.000000e+00> : vector<8x32xf32>
    %3 = tpu.matmul %1, %2, %cst {dimension_numbers = #tpu.dot_dimension_numbers<[1], [0], [0], [1], [0, 0, 1, 1], [], []>} : vector<8x16xbf16>, vector<16x32xbf16>, vector<8x32xf32> -> vector<8x32xf32>
    %c0_3 = arith.constant 0 : index
    %c0_4 = arith.constant 0 : index
    %4 = vector.load %arg3[%c0_3, %c0_4] : memref<1x32xf32, #tpu.memory_space<vmem>>, vector<1x32xf32>
    %5 = vector.broadcast %4 : vector<1x32xf32> to vector<8x32xf32>
    %6 = arith.addf %3, %5 : vector<8x32xf32>
    %7 = arith.truncf %6 : vector<8x32xf32> to vector<8x32xbf16>
    %8 = math.tanh %7 : vector<8x32xbf16>
    %c0_5 = arith.constant 0 : index
    %c0_6 = arith.constant 0 : index
    %9 = vector.load %arg4[%c0_5, %c0_6] : memref<32x32xbf16, #tpu.memory_space<vmem>>, vector<32x32xbf16>
    %cst_7 = arith.constant dense<0.000000e+00> : vector<8x32xf32>
    %10 = tpu.matmul %8, %9, %cst_7 {dimension_numbers = #tpu.dot_dimension_numbers<[1], [0], [0], [1], [0, 0, 1, 1], [], []>} : vector<8x32xbf16>, vector<32x32xbf16>, vector<8x32xf32> -> vector<8x32xf32>
    %c0_8 = arith.constant 0 : index
    %c0_9 = arith.constant 0 : index
    %11 = vector.load %arg5[%c0_8, %c0_9] : memref<1x32xf32, #tpu.memory_space<vmem>>, vector<1x32xf32>
    %12 = vector.broadcast %11 : vector<1x32xf32> to vector<8x32xf32>
    %13 = arith.addf %10, %12 : vector<8x32xf32>
    %14 = arith.truncf %13 : vector<8x32xf32> to vector<8x32xbf16>
    %15 = math.tanh %14 : vector<8x32xbf16>
    %c0_10 = arith.constant 0 : index
    %c0_11 = arith.constant 0 : index
    %16 = vector.load %arg6[%c0_10, %c0_11] : memref<32x128xbf16, #tpu.memory_space<vmem>>, vector<32x128xbf16>
    %cst_12 = arith.constant dense<0.000000e+00> : vector<8x128xf32>
    %17 = tpu.matmul %15, %16, %cst_12 {dimension_numbers = #tpu.dot_dimension_numbers<[1], [0], [0], [1], [0, 0, 1, 1], [], []>} : vector<8x32xbf16>, vector<32x128xbf16>, vector<8x128xf32> -> vector<8x128xf32>
    %c0_13 = arith.constant 0 : index
    %c0_14 = arith.constant 0 : index
    %18 = vector.load %arg7[%c0_13, %c0_14] : memref<1x128xf32, #tpu.memory_space<vmem>>, vector<1x128xf32>
    %19 = vector.broadcast %18 : vector<1x128xf32> to vector<8x128xf32>
    %20 = arith.addf %17, %19 : vector<8x128xf32>
    %21 = arith.truncf %20 : vector<8x128xf32> to vector<8x128xbf16>
    %c0_15 = arith.constant 0 : index
    %c0_16 = arith.constant 0 : index
    %22 = vector.load %arg8[%c0_15, %c0_16] : memref<8x128xbf16, #tpu.memory_space<vmem>>, vector<8x128xbf16>
    tpu.vector_store %arg8[%c0_15, %c0_16], %21 {strides = array<i32>} : memref<8x128xbf16, #tpu.memory_space<vmem>>, vector<8x128xbf16>,
    return
  }
  func.func @transform_0(%arg0: i32) -> (i32, i32) {
    %c0_i32 = arith.constant 0 : i32
    %c0_i32_0 = arith.constant 0 : i32
    return %arg0, %c0_i32 : i32, i32
  }
  func.func @transform_1(%arg0: i32) -> (i32, i32) {
    %c0_i32 = arith.constant 0 : i32
    %c0_i32_0 = arith.constant 0 : i32
    %c0_i32_1 = arith.constant 0 : i32
    return %c0_i32, %c0_i32_0 : i32, i32
  }
  func.func @transform_2(%arg0: i32) -> (i32, i32) {
    %c0_i32 = arith.constant 0 : i32
    %c0_i32_0 = arith.constant 0 : i32
    %c0_i32_1 = arith.constant 0 : i32
    return %c0_i32, %c0_i32_0 : i32, i32
  }
  func.func @transform_3(%arg0: i32) -> (i32, i32) {
    %c0_i32 = arith.constant 0 : i32
    %c0_i32_0 = arith.constant 0 : i32
    %c0_i32_1 = arith.constant 0 : i32
    return %c0_i32, %c0_i32_0 : i32, i32
  }
  func.func @transform_4(%arg0: i32) -> (i32, i32) {
    %c0_i32 = arith.constant 0 : i32
    %c0_i32_0 = arith.constant 0 : i32
    %c0_i32_1 = arith.constant 0 : i32
    return %c0_i32, %c0_i32_0 : i32, i32
  }
  func.func @transform_5(%arg0: i32) -> (i32, i32) {
    %c0_i32 = arith.constant 0 : i32
    %c0_i32_0 = arith.constant 0 : i32
    %c0_i32_1 = arith.constant 0 : i32
    return %c0_i32, %c0_i32_0 : i32, i32
  }
  func.func @transform_6(%arg0: i32) -> (i32, i32) {
    %c0_i32 = arith.constant 0 : i32
    %c0_i32_0 = arith.constant 0 : i32
    %c0_i32_1 = arith.constant 0 : i32
    return %c0_i32, %c0_i32_0 : i32, i32
  }
  func.func @transform_7(%arg0: i32) -> (i32, i32) {
    %c0_i32 = arith.constant 0 : i32
    %c0_i32_0 = arith.constant 0 : i32
    return %arg0, %c0_i32 : i32, i32
  }
}

</mosaic_0001>

<llo_original>
// kernel: policy_network_forward.1
$region0: #{policy_network_forward.1}
  #allocation0 [shape = 'u32[]', space=smem, size = 0x4, offset = 0x4, fixed_abs, tag = 'smem constant byte address 0x4 - core index']
  #allocation1 [shape = 'u32[144,128]{1,0:T(1,128)}', space=vmem, size = 0x12000, scoped, tag = 'internal scratch']
  %s0 = inlined_call_operand.hbm [shape: f32[8,16], index: 0, kind: input, shape index: {}]
  %s1 = inlined_call_operand.hbm [shape: bf16[16,32], index: 1, kind: input, shape index: {}]
  %s2 = inlined_call_operand.vmem [shape: f32[1,32], index: 2, kind: input, shape index: {}]
  %s3 = inlined_call_operand.vmem [shape: bf16[32,32], index: 3, kind: input, shape index: {}]
  %s4 = inlined_call_operand.vmem [shape: f32[1,32], index: 4, kind: input, shape index: {}]
  %s5 = inlined_call_operand.hbm [shape: bf16[32,128], index: 5, kind: input, shape index: {}]
  %s6 = inlined_call_operand.hbm [shape: f32[1,128], index: 6, kind: input, shape index: {}]
  %s7 = inlined_call_operand.vmem [shape: bf16[8,128], index: 7, kind: output, shape index: {}]
  %s8 = sld [smem:[#allocation0]]
  $region54: #{policy_network_forward.1} parent=0
    _
  %s10 = ssub.s32 1, %s8
  %s11 = scalar_select 0, %s10, %s8
  $region1: #{policy_network_forward.1} parent=0
    #allocation2 [shape = 'u8[4096]{0}', space=vmem, size = 0x1000, scoped, tag = 'input window, operand 0, single buffered']
    #allocation3 [shape = 's32[1]{0}', space=sflag, size = 0x4, scoped, tag = 'scoped memory for policy_network_forward.1']
    #allocation4 [shape = 'u8[4096]{0}', space=vmem, size = 0x1000, scoped, tag = 'input window, operand 1, single buffered']
    #allocation5 [shape = 's32[1]{0}', space=sflag, size = 0x4, scoped, tag = 'scoped memory for policy_network_forward.1']
    #allocation6 [shape = 'u8[8192]{0}', space=vmem, size = 0x2000, scoped, tag = 'input window, operand 5, single buffered']
    #allocation7 [shape = 'u8[512]{0}', space=vmem, size = 0x400, scoped, tag = 'input window, operand 6, single buffered']
    #allocation8 [shape = 's32[1]{0}', space=sflag, size = 0x4, scoped, tag = 'scoped memory for policy_network_forward.1']
    %12 = vsyncpa [#allocation3], 0
    %13 = vsyncpa [#allocation5], 0
    %14 = vsyncpa [#allocation8], 0
    // Predicated region
    $region2: #{policy_network_forward.1} parent=1 // pred_check
      _
    $region3: #{policy_network_forward.1} parent=1 // pred_check_branch
      %16 = sbr.rel (0) target = $region5
    $region4: #{policy_network_forward.1} parent=1 // pred_region
      %s18 = ssub.s32 128, 128
      %19 = vsyncadd [#allocation3], %s18
      %s21 = sshll.u32 [#allocation2], 4
      %s22 = int_to_ptr.vmem [resolvable:$true] %s21
      %24 = dma.hbm_to_vmem [thread:$0]  %s0, 128, %s22, [#allocation3]
    $region5: #{policy_network_forward.1} parent=1 // pred_fallthru
      _
    // Predicated region
    $region6: #{policy_network_forward.1} parent=1 // pred_check
      _
    $region7: #{policy_network_forward.1} parent=1 // pred_check_branch
      %26 = sbr.rel (0) target = $region9
    $region8: #{policy_network_forward.1} parent=1 // pred_region
      %s28 = ssub.s32 128, 128
      %29 = vsyncadd [#allocation5], %s28
      %s30 = sshll.u32 [#allocation4], 4
      %s31 = int_to_ptr.vmem [resolvable:$true] %s30
      %36 = dma.hbm_to_vmem [thread:$0]  %s1, 128, %s31, [#allocation5], 64, 64, 4
    $region9: #{policy_network_forward.1} parent=1 // pred_fallthru
      _
    // Predicated region
    $region10: #{policy_network_forward.1} parent=1 // pred_check
      _
    $region11: #{policy_network_forward.1} parent=1 // pred_check_branch
      %38 = sbr.rel (0) target = $region13
    $region12: #{policy_network_forward.1} parent=1 // pred_region
      _
    $region13: #{policy_network_forward.1} parent=1 // pred_fallthru
      _
    // Predicated region
    $region14: #{policy_network_forward.1} parent=1 // pred_check
      _
    $region15: #{policy_network_forward.1} parent=1 // pred_check_branch
      %40 = sbr.rel (0) target = $region17
    $region16: #{policy_network_forward.1} parent=1 // pred_region
      _
    $region17: #{policy_network_forward.1} parent=1 // pred_fallthru
      _
    // Predicated region
    $region18: #{policy_network_forward.1} parent=1 // pred_check
      _
    $region19: #{policy_network_forward.1} parent=1 // pred_check_branch
      %42 = sbr.rel (0) target = $region21
    $region20: #{policy_network_forward.1} parent=1 // pred_region
      _
    $region21: #{policy_network_forward.1} parent=1 // pred_fallthru
      _
    // Predicated region
    $region22: #{policy_network_forward.1} parent=1 // pred_check
      _
    $region23: #{policy_network_forward.1} parent=1 // pred_check_branch
      %44 = sbr.rel (0) target = $region25
    $region24: #{policy_network_forward.1} parent=1 // pred_region
      %s46 = ssub.s32 256, 256
      %47 = vsyncadd [#allocation5], %s46
      %s48 = sshll.u32 [#allocation6], 4
      %s49 = int_to_ptr.vmem [resolvable:$true] %s48
      %54 = dma.hbm_to_vmem [thread:$0]  %s5, 256, %s49, [#allocation5], 64, 64, 4
    $region25: #{policy_network_forward.1} parent=1 // pred_fallthru
      _
    // Predicated region
    $region26: #{policy_network_forward.1} parent=1 // pred_check
      _
    $region27: #{policy_network_forward.1} parent=1 // pred_check_branch
      %56 = sbr.rel (0) target = $region29
    $region28: #{policy_network_forward.1} parent=1 // pred_region
      %s58 = ssub.s32 16, 16
      %59 = vsyncadd [#allocation8], %s58
      %s61 = sshll.u32 [#allocation7], 4
      %s62 = int_to_ptr.vmem [resolvable:$true] %s61
      %64 = dma.hbm_to_vmem [thread:$0]  %s6, 16, %s62, [#allocation8]
    $region29: #{policy_network_forward.1} parent=1 // pred_fallthru
      _
    // Predicated region
    $region30: #{policy_network_forward.1} parent=1 // pred_check
      _
    $region31: #{policy_network_forward.1} parent=1 // pred_check_branch
      %66 = sbr.rel (0) target = $region33
    $region32: #{policy_network_forward.1} parent=1 // pred_region
      %67 = dma.done [#allocation3], 128
    $region33: #{policy_network_forward.1} parent=1 // pred_fallthru
      _
    // Predicated region
    $region34: #{policy_network_forward.1} parent=1 // pred_check
      _
    $region35: #{policy_network_forward.1} parent=1 // pred_check_branch
      %69 = sbr.rel (0) target = $region37
    $region36: #{policy_network_forward.1} parent=1 // pred_region
      %70 = dma.done [#allocation5], 128
    $region37: #{policy_network_forward.1} parent=1 // pred_fallthru
      _
    // Predicated region
    $region38: #{policy_network_forward.1} parent=1 // pred_check
      _
    $region39: #{policy_network_forward.1} parent=1 // pred_check_branch
      %72 = sbr.rel (0) target = $region41
    $region40: #{policy_network_forward.1} parent=1 // pred_region
      %73 = dma.done [#allocation5], 256
    $region41: #{policy_network_forward.1} parent=1 // pred_fallthru
      _
    // Predicated region
    $region42: #{policy_network_forward.1} parent=1 // pred_check
      _
    $region43: #{policy_network_forward.1} parent=1 // pred_check_branch
      %75 = sbr.rel (0) target = $region45
    $region44: #{policy_network_forward.1} parent=1 // pred_region
      %76 = dma.done [#allocation8], 16
    $region45: #{policy_network_forward.1} parent=1 // pred_fallthru
      _
    %v78 = vld [vmem:[#allocation2] sm:$0xff]
    %v79 = vpack.c.bf16 %v78, %v78
    %v80 = vld [vmem:[#allocation4] sm:$0xf]
    %v81 = vld [vmem:[#allocation4 + $0x4] sm:$0xf]
    %v82 = vld [vmem:[%s2] sm:$0x1]
    %v84 = vlaneseq
    %v85 = vshrl.u32 %v84, 7
    %v86 = vsub.s32 0, %v85
    %v87 = vrot.slane %v82, %v86
    %v91 = vunpack.c.l.b16 %v80
    %v92 = vunpack.c.l.b16 %v81
    %v93 = vpack.c.b16 %v92, %v91
    %vm95 = vcmask 130048
    %v97 = vsel %vm95, %v79, 0
    %99 = vmatprep.subr.bf16.mxu0 0
    %100 = vmatpush1.bf16.msra.mxu0 %v93
    %101 = vmatprep.subr.bf16.mxu0 0
    %102 = vmatpush1.bf16.msra.mxu0 0
    %103 = vmatprep.subr.bf16.mxu0 0
    %104 = vmatpush1.bf16.msra.mxu0 0
    %105 = vmatprep.subr.bf16.mxu0 0
    %106 = vmatpush1.bf16.msra.mxu0 0
    %107 = vmatprep.subr.bf16.mxu0 0
    %108 = vmatpush1.bf16.msra.mxu0 0
    %109 = vmatprep.subr.bf16.mxu0 0
    %110 = vmatpush1.bf16.msra.mxu0 0
    %111 = vmatprep.subr.bf16.mxu0 0
    %112 = vmatpush1.bf16.msra.mxu0 0
    %113 = vmatprep.subr.bf16.mxu0 0
    %114 = vmatpush1.bf16.msra.mxu0 0
    %115 = vmatprep.subr.bf16.mxu0 0
    %116 = vmatpush1.bf16.msra.mxu0 0
    %117 = vmatprep.subr.bf16.mxu0 0
    %118 = vmatpush1.bf16.msra.mxu0 0
    %119 = vmatprep.subr.bf16.mxu0 0
    %120 = vmatpush1.bf16.msra.mxu0 0
    %121 = vmatprep.subr.bf16.mxu0 0
    %122 = vmatpush1.bf16.msra.mxu0 0
    %123 = vmatprep.subr.bf16.mxu0 0
    %124 = vmatpush1.bf16.msra.mxu0 0
    %125 = vmatprep.subr.bf16.mxu0 0
    %126 = vmatpush1.bf16.msra.mxu0 0
    %127 = vmatprep.subr.bf16.mxu0 0
    %128 = vmatpush1.bf16.msra.mxu0 0
    %129 = vmatprep.subr.bf16.mxu0 0
    %130 = vmatpush1.bf16.msra.mxu0 0
    %131 = vmatprep.mubr.bf16.mxu0 0
    %132 = vmatmul.mubr.bf16.gmra.mrb[0].mxu0 %v97
    %v133 = vpop.f32.mrb[0].mxu0
    %v134 = vadd.f32 %v87, %v133
    %v135 = vpop.f32.mrb[0].mxu0
    %v136 = vpop.f32.mrb[0].mxu0
    %v137 = vpop.f32.mrb[0].mxu0
    %138 = vdwg.mxu0
    %v139 = vpack.c.bf16 %v134, %v134
    %v140 = vtanh.bf16.pop %v139
    %v141 = vld [vmem:[%s3] sm:$0xf]
    %v142 = vld [vmem:[%s3 + $0x4] sm:$0xf]
    %v143 = vld [vmem:[%s3 + $0x8] sm:$0xf]
    %v144 = vld [vmem:[%s3 + $0xc] sm:$0xf]
    %v145 = vld [vmem:[%s4] sm:$0x1]
    %v147 = vlaneseq
    %v148 = vshrl.u32 %v147, 7
    %v149 = vsub.s32 0, %v148
    %v150 = vrot.slane %v145, %v149
    %v156 = vunpack.c.l.b16 %v141
    %v157 = vunpack.c.l.b16 %v142
    %v158 = vunpack.c.l.b16 %v143
    %v159 = vunpack.c.l.b16 %v144
    %v160 = vpack.c.b16 %v157, %v156
    %v161 = vpack.c.b16 %v159, %v158
    %vm164 = vcmask 261120
    %v166 = vsel %vm164, %v140, 0
    %168 = vmatprep.subr.bf16.mxu0 0
    %169 = vmatpush1.bf16.msra.mxu0 %v160
    %170 = vmatprep.subr.bf16.mxu0 0
    %171 = vmatpush1.bf16.msra.mxu0 %v161
    %172 = vmatprep.subr.bf16.mxu0 0
    %173 = vmatpush1.bf16.msra.mxu0 0
    %174 = vmatprep.subr.bf16.mxu0 0
    %175 = vmatpush1.bf16.msra.mxu0 0
    %176 = vmatprep.subr.bf16.mxu0 0
    %177 = vmatpush1.bf16.msra.mxu0 0
    %178 = vmatprep.subr.bf16.mxu0 0
    %179 = vmatpush1.bf16.msra.mxu0 0
    %180 = vmatprep.subr.bf16.mxu0 0
    %181 = vmatpush1.bf16.msra.mxu0 0
    %182 = vmatprep.subr.bf16.mxu0 0
    %183 = vmatpush1.bf16.msra.mxu0 0
    %184 = vmatprep.subr.bf16.mxu0 0
    %185 = vmatpush1.bf16.msra.mxu0 0
    %186 = vmatprep.subr.bf16.mxu0 0
    %187 = vmatpush1.bf16.msra.mxu0 0
    %188 = vmatprep.subr.bf16.mxu0 0
    %189 = vmatpush1.bf16.msra.mxu0 0
    %190 = vmatprep.subr.bf16.mxu0 0
    %191 = vmatpush1.bf16.msra.mxu0 0
    %192 = vmatprep.subr.bf16.mxu0 0
    %193 = vmatpush1.bf16.msra.mxu0 0
    %194 = vmatprep.subr.bf16.mxu0 0
    %195 = vmatpush1.bf16.msra.mxu0 0
    %196 = vmatprep.subr.bf16.mxu0 0
    %197 = vmatpush1.bf16.msra.mxu0 0
    %198 = vmatprep.subr.bf16.mxu0 0
    %199 = vmatpush1.bf16.msra.mxu0 0
    %200 = vmatprep.mubr.bf16.mxu0 0
    %201 = vmatmul.mubr.bf16.gmra.mrb[0].mxu0 %v166
    %v202 = vpop.f32.mrb[0].mxu0
    %v203 = vadd.f32 %v150, %v202
    %v204 = vpop.f32.mrb[0].mxu0
    %v205 = vpop.f32.mrb[0].mxu0
    %v206 = vpop.f32.mrb[0].mxu0
    %207 = vdwg.mxu0
    %v208 = vpack.c.bf16 %v203, %v203
    %v209 = vtanh.bf16.pop %v208
    %v210 = vld [vmem:[#allocation6] sm:$0xf]
    %v211 = vld [vmem:[#allocation6 + $0x4] sm:$0xf]
    %v212 = vld [vmem:[#allocation6 + $0x8] sm:$0xf]
    %v213 = vld [vmem:[#allocation6 + $0xc] sm:$0xf]
    %v214 = vld [vmem:[#allocation7] sm:$0x1]
    %v216 = vlaneseq
    %v217 = vshrl.u32 %v216, 7
    %v218 = vsub.s32 0, %v217
    %v219 = vrot.slane %v214, %v218
    %v225 = vunpack.c.l.b16 %v210
    %v226 = vunpack.c.l.b16 %v211
    %v227 = vunpack.c.l.b16 %v212
    %v228 = vunpack.c.l.b16 %v213
    %v229 = vpack.c.b16 %v226, %v225
    %v230 = vpack.c.b16 %v228, %v227
    %v234 = vsel %vm164, %v209, 0
    %236 = vmatprep.subr.bf16.mxu0 0
    %237 = vmatpush1.bf16.msra.mxu0 %v229
    %238 = vmatprep.subr.bf16.mxu0 0
    %239 = vmatpush1.bf16.msra.mxu0 %v230
    %240 = vmatprep.subr.bf16.mxu0 0
    %241 = vmatpush1.bf16.msra.mxu0 0
    %242 = vmatprep.subr.bf16.mxu0 0
    %243 = vmatpush1.bf16.msra.mxu0 0
    %244 = vmatprep.subr.bf16.mxu0 0
    %245 = vmatpush1.bf16.msra.mxu0 0
    %246 = vmatprep.subr.bf16.mxu0 0
    %247 = vmatpush1.bf16.msra.mxu0 0
    %248 = vmatprep.subr.bf16.mxu0 0
    %249 = vmatpush1.bf16.msra.mxu0 0
    %250 = vmatprep.subr.bf16.mxu0 0
    %251 = vmatpush1.bf16.msra.mxu0 0
    %252 = vmatprep.subr.bf16.mxu0 0
    %253 = vmatpush1.bf16.msra.mxu0 0
    %254 = vmatprep.subr.bf16.mxu0 0
    %255 = vmatpush1.bf16.msra.mxu0 0
    %256 = vmatprep.subr.bf16.mxu0 0
    %257 = vmatpush1.bf16.msra.mxu0 0
    %258 = vmatprep.subr.bf16.mxu0 0
    %259 = vmatpush1.bf16.msra.mxu0 0
    %260 = vmatprep.subr.bf16.mxu0 0
    %261 = vmatpush1.bf16.msra.mxu0 0
    %262 = vmatprep.subr.bf16.mxu0 0
    %263 = vmatpush1.bf16.msra.mxu0 0
    %264 = vmatprep.subr.bf16.mxu0 0
    %265 = vmatpush1.bf16.msra.mxu0 0
    %266 = vmatprep.subr.bf16.mxu0 0
    %267 = vmatpush1.bf16.msra.mxu0 0
    %268 = vmatprep.mubr.bf16.mxu0 0
    %269 = vmatmul.mubr.bf16.gmra.mrb[0].mxu0 %v234
    %v270 = vpop.f32.mrb[0].mxu0
    %v271 = vadd.f32 %v219, %v270
    %v272 = vpop.f32.mrb[0].mxu0
    %v273 = vpop.f32.mrb[0].mxu0
    %v274 = vpop.f32.mrb[0].mxu0
    %275 = vdwg.mxu0
    %v276 = vpack.c.bf16 %v271, %v271
    %277 = vst [vmem:[%s7] sm:$0xf] %v276
    // Predicated region
    $region46: #{policy_network_forward.1} parent=1 // pred_check
      _
    $region47: #{policy_network_forward.1} parent=1 // pred_check_branch
      %279 = sbr.rel (0) target = $region49
    $region48: #{policy_network_forward.1} parent=1 // pred_region
      _
    $region49: #{policy_network_forward.1} parent=1 // pred_fallthru
      _
    // Predicated region
    $region50: #{policy_network_forward.1} parent=1 // pred_check
      _
    $region51: #{policy_network_forward.1} parent=1 // pred_check_branch
      %281 = sbr.rel (0) target = $region53
    $region52: #{policy_network_forward.1} parent=1 // pred_region
      _
    $region53: #{policy_network_forward.1} parent=1 // pred_fallthru
      _
    %282 = vsyncpa [#allocation3], 1
    %283 = vsyncpa [#allocation5], 1
    %284 = vsyncpa [#allocation8], 1

</llo_original>
